<compile_context>
chip_gen: v5e
topology: v5e:2x2
jax: 0.10.0
libtpu: 0.0.40
codegen_flags: <defaults>
</compile_context>

<pallas_src>
import functools
import math

import numpy as np
import jax
import jax.numpy as jnp
from jax.experimental import pallas as pl
from jax.experimental.pallas import tpu as pltpu


def _cdiv(a, b):
    return -(-a // b)


def _round_up(a, b):
    return _cdiv(a, b) * b


# ----------------------------------------------------------------------------
# Kernel 1: sliding-window data extraction
# ----------------------------------------------------------------------------
def _sliding_window_kernel(lo_ref, hi_ref, o_ref, *, f_blk, hop, win, b_t,
                           valid_len, needs_mask):
    """One grid step = one block of `f_blk` consecutive output frames.

    lo_ref: (C, b_t)  time tile [fb*b_t, (fb+1)*b_t)         (fb = program_id(0))
    hi_ref: (C, b_t)  next time tile (clamped at the array end; only its first
                      `win - hop` samples are ever needed by valid frames)
    o_ref : (f_blk, C, win) output frames fb*f_blk .. fb*f_blk + f_blk - 1
    """
    if needs_mask:
        blk0 = pl.program_id(0) * b_t  # absolute sample offset of lo_ref[:, 0]

    # Static unroll: every slice below has a compile-time start/size, so each
    # frame is a plain contiguous vld/vst copy (no lane rotations).
    for f in range(f_blk):
        s = f * hop          # local window start inside lo_ref
        e = s + win
        if e <= b_t:
            w = lo_ref[:, s:e]
        else:                # window straddles the lo/hi tile boundary
            w = jnp.concatenate([lo_ref[:, s:], hi_ref[:, : e - b_t]], axis=-1)
        if needs_mask:
            # Only reachable when the input is shorter than one window
            # (n_frames forced to 1): zero samples at absolute pos >= valid_len.
            pos = blk0 + s + jax.lax.broadcasted_iota(jnp.int32, w.shape, 1)
            w = jnp.where(pos < valid_len, w, jnp.zeros_like(w))
        o_ref[f] = w


def sliding_window_transform(x, *, sampling_rate, window_size, hop_length):
    """JAX/Pallas equivalent of the sliding-window forward (per-sample)."""
    if sampling_rate is None or window_size is None:
        raise ValueError("sampling_rate, window_size cannot be None.")
    if hop_length is None or hop_length <= 0:
        raise ValueError("hop_length must be > 0.")

    x = jnp.asarray(x, jnp.float32)
    lead = x.shape[:-1]
    T = x.shape[-1]
    C = int(np.prod(lead)) if len(lead) > 0 else 1
    x2 = x.reshape(C, T)

    total_length = T // sampling_rate                      # whole seconds
    win = int(window_size * sampling_rate)                 # samples / window
    hop = int(hop_length * sampling_rate)                  # samples / hop
    n_frames = max(1, 1 + int((total_length - window_size) / hop_length))
    valid_len = total_length * sampling_rate               # valid samples

    # ---- frame-block (frames per grid step) selection -----------------------
    # b_t = f_blk * hop is the input tile width; it must be a multiple of 128
    # lanes, and two adjacent tiles must cover any window in the block.
    align_f = 128 // math.gcd(hop, 128)                    # lane alignment
    f_min = _round_up(max(1, _cdiv(win, hop) - 1), align_f)
    bytes_per_frame = 4 * C * win
    f_tgt = _round_up(max(1, (1 << 20) // max(bytes_per_frame, 1)), align_f)
    f_tgt = min(f_tgt, _round_up(256, align_f))            # cap static unroll
    f_blk = max(f_min, min(f_tgt, _round_up(n_frames, align_f)))
    if _cdiv(n_frames, f_blk) < 2 and n_frames > 1:
        # keep >= 2 grid steps so both v7x TensorCores get work
        f_half = _round_up(_cdiv(n_frames, 2), align_f)
        if f_min <= f_half < n_frames:
            f_blk = f_half
    # TODO(synk): for exotic hop sizes (odd sample counts) the 128-lane alignment
    # can force large f_blk/b_t; a manual-DMA (pl.ANY) fallback would lift that.

    b_t = f_blk * hop
    nfb = _cdiv(n_frames, f_blk)            # grid steps (frame blocks)
    n_tb = _cdiv(T, b_t)                    # time tiles available in x2

    needs_mask = (n_frames - 1) * hop + win > valid_len   # only short-input case

    kernel = functools.partial(
        _sliding_window_kernel,
        f_blk=f_blk, hop=hop, win=win, b_t=b_t,
        valid_len=valid_len, needs_mask=needs_mask,
    )

    # Explicit VMEM budget: 2x pipeline buffering of (lo + hi + out) tiles,
    # with sublane/lane padding accounted for.
    c_pad = _round_up(C, 8)
    vmem_need = 2 * (2 * c_pad * b_t + f_blk * c_pad * _round_up(win, 128)) * 4
    vmem_limit = int(min(96 << 20, vmem_need + (8 << 20)))

    out = pl.pallas_call(
        kernel,
        out_shape=jax.ShapeDtypeStruct((n_frames, C, win), jnp.float32),
        grid=(nfb,),
        in_specs=[
            # streamed input: tile fb and tile fb+1 (clamped at the array end)
            pl.BlockSpec((C, b_t), lambda i: (0, i)),
            pl.BlockSpec((C, b_t), lambda i: (0, jnp.minimum(i + 1, n_tb - 1))),
        ],
        out_specs=pl.BlockSpec((f_blk, C, win), lambda i: (i, 0, 0)),
        compiler_params=pltpu.CompilerParams(
            dimension_semantics=("parallel",),
            vmem_limit_bytes=vmem_limit,
        ),
    )(x2, x2)

    return out.reshape((n_frames,) + tuple(lead) + (win,))


# ----------------------------------------------------------------------------
# Kernel 2: PreprocessSlidingWindowMetadata numeric core (per-row window counts)
# ----------------------------------------------------------------------------
def _window_counts_kernel(dur_ref, nw_ref, *, window_size, hop_length):
    d = dur_ref[...]                                       # (1, N) float32
    # int() in the reference truncates toward zero; float->int cast does the same.
    nw = ((d - window_size) / hop_length).astype(jnp.int32) + 1
    nw_ref[...] = jnp.maximum(nw, 1)


def preprocess_sliding_window_metadata(durations, *, window_size, hop_length):
    """Per-row num_windows + exclusive row offsets + total expanded row count."""
    if hop_length is None or hop_length <= 0:
        raise ValueError("hop_length must be > 0.")
    d = jnp.asarray(durations, jnp.float32).reshape(1, -1)
    n = d.shape[1]
    nw = pl.pallas_call(
        functools.partial(_window_counts_kernel,
                          window_size=float(window_size),
                          hop_length=float(hop_length)),
        out_shape=jax.ShapeDtypeStruct((1, n), jnp.int32),
    )(d)[0]
    # TODO(synk): the pandas DataFrame row replication (copying every metadata row
    # nw[i] times and attaching preprocess_index 0..nw[i]-1) is host-side,
    # dynamically-shaped, non-numeric work with no Pallas equivalent.
    offsets = jnp.cumsum(nw) - nw          # exclusive prefix sum of row counts
    total = jnp.sum(nw)
    return nw, offsets, total


# ----------------------------------------------------------------------------
# references + demo
# ----------------------------------------------------------------------------
def _numpy_reference(x, sampling_rate, window_size, hop_length):
    """Pure-numpy transcription of the sliding-window forward (non-error case)."""
    x = np.asarray(x, np.float32)
    T = x.shape[-1]
    lead = x.shape[:-1]
    total_length = T // sampling_rate
    win = int(window_size * sampling_rate)
    hop = int(hop_length * sampling_rate)
    n_frames = max(1, 1 + int((total_length - window_size) / hop_length))
    out = np.zeros((n_frames,) + lead + (win,), np.float32)
    L = total_length * sampling_rate
    for w in range(n_frames):
        start = w * hop
        end = start + win
        seg = x[..., start:min(end, L)]
        out[w, ..., : seg.shape[-1]] = seg
    return out


if __name__ == "__main__":
    key = jax.random.PRNGKey(0)

    # --- sliding-window data kernel: (channels, n_time) = (4, 128), 16 Hz,
    #     window 2.0 s (32 samples), hop 1.0 s (16 samples) -> (7, 4, 32)
    sampling_rate = 16
    window_size = 2.0
    hop_length = 1.0
    x = jax.random.normal(key, (4, 128), dtype=jnp.float32)

    y = sliding_window_transform(
        x, sampling_rate=sampling_rate, window_size=window_size,
        hop_length=hop_length)
    y = jax.block_until_ready(y)

    ref = _numpy_reference(np.asarray(x), sampling_rate, window_size, hop_length)
    assert y.shape == ref.shape, (y.shape, ref.shape)
    np.testing.assert_allclose(np.asarray(y), ref, rtol=0, atol=0)

    # --- metadata kernel: per-row window counts (the numeric core of the module)
    durations = jnp.asarray([8.0, 2.0, 1.0, 5.5, 3.25, 10.0], jnp.float32)
    nw, offs, total = preprocess_sliding_window_metadata(
        durations, window_size=window_size, hop_length=hop_length)
    nw = jax.block_until_ready(nw)

    nw_ref = np.asarray(
        [max(1, int((float(d) - window_size) / hop_length) + 1)
         for d in np.asarray(durations)], np.int32)
    np.testing.assert_array_equal(np.asarray(nw), nw_ref)
    offs_ref = (np.cumsum(nw_ref) - nw_ref).astype(np.int32)
    np.testing.assert_array_equal(np.asarray(offs), offs_ref)
    assert int(total) == int(nw_ref.sum())

    print("KERNEL_OK")
</pallas_src>

<mosaic_0001>
module attributes {stable_mosaic.version = 11 : i64} {
  func.func @_sliding_window_kernel(%arg0: i32, %arg1: memref<4x128xf32, #tpu.memory_space<vmem>>, %arg2: memref<4x128xf32, #tpu.memory_space<vmem>>, %arg3: memref<8x4x32xf32, #tpu.memory_space<vmem>>) attributes {dimension_semantics = [#tpu.dimension_semantics<parallel>], iteration_bounds = array<i64: 1>, scalar_prefetch = 0 : i64, scratch_operands = 0 : i64, tpu.core_type = #tpu.core_type<tc>, window_params = [{transform_indices = @transform_0, window_bounds = array<i64: 4, 128>}, {transform_indices = @transform_1, window_bounds = array<i64: 4, 128>}, {transform_indices = @transform_2, window_bounds = array<i64: 8, 4, 32>}]} {
    %c0 = arith.constant 0 : index
    %c0_0 = arith.constant 0 : index
    %0 = vector.load %arg1[%c0, %c0_0] : memref<4x128xf32, #tpu.memory_space<vmem>>, vector<4x32xf32>
    %c0_1 = arith.constant 0 : index
    %c0_2 = arith.constant 0 : index
    %c0_3 = arith.constant 0 : index
    %1 = vector.load %arg3[%c0_1, %c0_2, %c0_3] : memref<8x4x32xf32, #tpu.memory_space<vmem>>, vector<1x4x32xf32>
    %2 = vector.shape_cast %1 : vector<1x4x32xf32> to vector<4x32xf32>
    %3 = vector.shape_cast %0 : vector<4x32xf32> to vector<1x4x32xf32>
    tpu.vector_store %arg3[%c0_1, %c0_2, %c0_3], %3 {strides = array<i32>} : memref<8x4x32xf32, #tpu.memory_space<vmem>>, vector<1x4x32xf32>,
    %c0_4 = arith.constant 0 : index
    %c16 = arith.constant 16 : index
    %4 = vector.load %arg1[%c0_4, %c16] : memref<4x128xf32, #tpu.memory_space<vmem>>, vector<4x32xf32>
    %c1 = arith.constant 1 : index
    %c0_5 = arith.constant 0 : index
    %c0_6 = arith.constant 0 : index
    %5 = vector.load %arg3[%c1, %c0_5, %c0_6] : memref<8x4x32xf32, #tpu.memory_space<vmem>>, vector<1x4x32xf32>
    %6 = vector.shape_cast %5 : vector<1x4x32xf32> to vector<4x32xf32>
    %7 = vector.shape_cast %4 : vector<4x32xf32> to vector<1x4x32xf32>
    tpu.vector_store %arg3[%c1, %c0_5, %c0_6], %7 {strides = array<i32>} : memref<8x4x32xf32, #tpu.memory_space<vmem>>, vector<1x4x32xf32>,
    %c0_7 = arith.constant 0 : index
    %c32 = arith.constant 32 : index
    %8 = vector.load %arg1[%c0_7, %c32] : memref<4x128xf32, #tpu.memory_space<vmem>>, vector<4x32xf32>
    %c2 = arith.constant 2 : index
    %c0_8 = arith.constant 0 : index
    %c0_9 = arith.constant 0 : index
    %9 = vector.load %arg3[%c2, %c0_8, %c0_9] : memref<8x4x32xf32, #tpu.memory_space<vmem>>, vector<1x4x32xf32>
    %10 = vector.shape_cast %9 : vector<1x4x32xf32> to vector<4x32xf32>
    %11 = vector.shape_cast %8 : vector<4x32xf32> to vector<1x4x32xf32>
    tpu.vector_store %arg3[%c2, %c0_8, %c0_9], %11 {strides = array<i32>} : memref<8x4x32xf32, #tpu.memory_space<vmem>>, vector<1x4x32xf32>,
    %c0_10 = arith.constant 0 : index
    %c48 = arith.constant 48 : index
    %12 = vector.load %arg1[%c0_10, %c48] : memref<4x128xf32, #tpu.memory_space<vmem>>, vector<4x32xf32>
    %c3 = arith.constant 3 : index
    %c0_11 = arith.constant 0 : index
    %c0_12 = arith.constant 0 : index
    %13 = vector.load %arg3[%c3, %c0_11, %c0_12] : memref<8x4x32xf32, #tpu.memory_space<vmem>>, vector<1x4x32xf32>
    %14 = vector.shape_cast %13 : vector<1x4x32xf32> to vector<4x32xf32>
    %15 = vector.shape_cast %12 : vector<4x32xf32> to vector<1x4x32xf32>
    tpu.vector_store %arg3[%c3, %c0_11, %c0_12], %15 {strides = array<i32>} : memref<8x4x32xf32, #tpu.memory_space<vmem>>, vector<1x4x32xf32>,
    %c0_13 = arith.constant 0 : index
    %c64 = arith.constant 64 : index
    %16 = vector.load %arg1[%c0_13, %c64] : memref<4x128xf32, #tpu.memory_space<vmem>>, vector<4x32xf32>
    %c4 = arith.constant 4 : index
    %c0_14 = arith.constant 0 : index
    %c0_15 = arith.constant 0 : index
    %17 = vector.load %arg3[%c4, %c0_14, %c0_15] : memref<8x4x32xf32, #tpu.memory_space<vmem>>, vector<1x4x32xf32>
    %18 = vector.shape_cast %17 : vector<1x4x32xf32> to vector<4x32xf32>
    %19 = vector.shape_cast %16 : vector<4x32xf32> to vector<1x4x32xf32>
    tpu.vector_store %arg3[%c4, %c0_14, %c0_15], %19 {strides = array<i32>} : memref<8x4x32xf32, #tpu.memory_space<vmem>>, vector<1x4x32xf32>,
    %c0_16 = arith.constant 0 : index
    %c80 = arith.constant 80 : index
    %20 = vector.load %arg1[%c0_16, %c80] : memref<4x128xf32, #tpu.memory_space<vmem>>, vector<4x32xf32>
    %c5 = arith.constant 5 : index
    %c0_17 = arith.constant 0 : index
    %c0_18 = arith.constant 0 : index
    %21 = vector.load %arg3[%c5, %c0_17, %c0_18] : memref<8x4x32xf32, #tpu.memory_space<vmem>>, vector<1x4x32xf32>
    %22 = vector.shape_cast %21 : vector<1x4x32xf32> to vector<4x32xf32>
    %23 = vector.shape_cast %20 : vector<4x32xf32> to vector<1x4x32xf32>
    tpu.vector_store %arg3[%c5, %c0_17, %c0_18], %23 {strides = array<i32>} : memref<8x4x32xf32, #tpu.memory_space<vmem>>, vector<1x4x32xf32>,
    %c0_19 = arith.constant 0 : index
    %c96 = arith.constant 96 : index
    %24 = vector.load %arg1[%c0_19, %c96] : memref<4x128xf32, #tpu.memory_space<vmem>>, vector<4x32xf32>
    %c6 = arith.constant 6 : index
    %c0_20 = arith.constant 0 : index
    %c0_21 = arith.constant 0 : index
    %25 = vector.load %arg3[%c6, %c0_20, %c0_21] : memref<8x4x32xf32, #tpu.memory_space<vmem>>, vector<1x4x32xf32>
    %26 = vector.shape_cast %25 : vector<1x4x32xf32> to vector<4x32xf32>
    %27 = vector.shape_cast %24 : vector<4x32xf32> to vector<1x4x32xf32>
    tpu.vector_store %arg3[%c6, %c0_20, %c0_21], %27 {strides = array<i32>} : memref<8x4x32xf32, #tpu.memory_space<vmem>>, vector<1x4x32xf32>,
    %c0_22 = arith.constant 0 : index
    %c112 = arith.constant 112 : index
    %28 = vector.load %arg1[%c0_22, %c112] : memref<4x128xf32, #tpu.memory_space<vmem>>, vector<4x16xf32>
    %c0_23 = arith.constant 0 : index
    %c0_24 = arith.constant 0 : index
    %29 = vector.load %arg2[%c0_23, %c0_24] : memref<4x128xf32, #tpu.memory_space<vmem>>, vector<4x16xf32>
    %30 = tpu.concatenate %28, %29 in 1 : vector<4x16xf32>, vector<4x16xf32> -> vector<4x32xf32>
    %c7 = arith.constant 7 : index
    %c0_25 = arith.constant 0 : index
    %c0_26 = arith.constant 0 : index
    %31 = vector.load %arg3[%c7, %c0_25, %c0_26] : memref<8x4x32xf32, #tpu.memory_space<vmem>>, vector<1x4x32xf32>
    %32 = vector.shape_cast %31 : vector<1x4x32xf32> to vector<4x32xf32>
    %33 = vector.shape_cast %30 : vector<4x32xf32> to vector<1x4x32xf32>
    tpu.vector_store %arg3[%c7, %c0_25, %c0_26], %33 {strides = array<i32>} : memref<8x4x32xf32, #tpu.memory_space<vmem>>, vector<1x4x32xf32>,
    return
  }
  func.func @transform_0(%arg0: i32) -> (i32, i32) {
    %c0_i32 = arith.constant 0 : i32
    %c0_i32_0 = arith.constant 0 : i32
    return %c0_i32, %arg0 : i32, i32
  }
  func.func @transform_1(%arg0: i32) -> (i32, i32) {
    %c1_i32 = arith.constant 1 : i32
    %0 = arith.addi %arg0, %c1_i32 : i32
    %c0_i32 = arith.constant 0 : i32
    %1 = arith.minsi %0, %c0_i32 : i32
    %c0_i32_0 = arith.constant 0 : i32
    %c0_i32_1 = arith.constant 0 : i32
    return %c0_i32_0, %1 : i32, i32
  }
  func.func @transform_2(%arg0: i32) -> (i32, i32, i32) {
    %c0_i32 = arith.constant 0 : i32
    %c0_i32_0 = arith.constant 0 : i32
    %c0_i32_1 = arith.constant 0 : i32
    return %arg0, %c0_i32, %c0_i32_0 : i32, i32, i32
  }
}

</mosaic_0001>

<llo_original>
// kernel: tpu_custom_call.1
$region0: #{tpu_custom_call.1}
  #allocation0 [shape = 'u32[]', space=smem, size = 0x4, offset = 0x4, fixed_abs, tag = 'smem constant byte address 0x4 - core index']
  #allocation1 [shape = 'u32[72,128]{1,0:T(1,128)}', space=vmem, size = 0x9000, scoped, tag = 'internal scratch']
  %s0 = inlined_call_operand.hbm [shape: f32[4,128], index: 0, kind: input, shape index: {}]
  %s1 = inlined_call_operand.hbm [shape: f32[4,128], index: 1, kind: input, shape index: {}]
  %s2 = inlined_call_operand.hbm [shape: f32[7,4,32], index: 2, kind: output, shape index: {}]
  %s3 = sld [smem:[#allocation0]]
  $region26: #{tpu_custom_call.1} parent=0
    _
  %s5 = ssub.s32 1, %s3
  %s6 = scalar_select 0, %s5, %s3
  $region1: #{tpu_custom_call.1} parent=0
    #allocation2 [shape = 'u8[2048]{0}', space=vmem, size = 0x800, scoped, tag = 'input window, operand 0, single buffered']
    #allocation3 [shape = 's32[1]{0}', space=sflag, size = 0x4, scoped, tag = 'scoped memory for tpu_custom_call.1']
    #allocation4 [shape = 's32[1]{0}', space=sflag, size = 0x4, scoped, tag = 'scoped memory for tpu_custom_call.1']
    #allocation5 [shape = 'u8[2048]{0}', space=vmem, size = 0x800, scoped, tag = 'input window, operand 1, single buffered']
    #allocation6 [shape = 's32[1]{0}', space=sflag, size = 0x4, scoped, tag = 'scoped memory for tpu_custom_call.1']
    #allocation7 [shape = 'u8[16384]{0}', space=vmem, size = 0x4000, scoped, tag = 'output window, operand 0, single buffered']
    %7 = vsyncpa [#allocation3], 0
    %8 = vsyncpa [#allocation6], 0
    %9 = vsyncpa [#allocation4], 0
    // Predicated region
    $region2: #{tpu_custom_call.1} parent=1 // pred_check
      _
    $region3: #{tpu_custom_call.1} parent=1 // pred_check_branch
      %11 = sbr.rel (0) target = $region5
    $region4: #{tpu_custom_call.1} parent=1 // pred_region
      %13 = vsyncadd [#allocation3], 0
      %s15 = sshll.u32 %s0, 4
      %s16 = int_to_ptr.hbm [resolvable:$true] %s15
      %s17 = sshll.u32 [#allocation2], 4
      %s18 = int_to_ptr.vmem [resolvable:$true] %s17
      %20 = dma.hbm_to_vmem [thread:$0]  %s16, 64, %s18, [#allocation3]
    $region5: #{tpu_custom_call.1} parent=1 // pred_fallthru
      _
    // Predicated region
    $region6: #{tpu_custom_call.1} parent=1 // pred_check
      _
    $region7: #{tpu_custom_call.1} parent=1 // pred_check_branch
      %22 = sbr.rel (0) target = $region9
    $region8: #{tpu_custom_call.1} parent=1 // pred_region
      %s23 = sadd.s32 0, 1
      %p24 = scmp.lt.s32.totalorder %s23, 0
      %s25 = scalar_select %p24, %s23, 0
      %27 = vsyncadd [#allocation6], 0
      %s28 = smul.addr %s25, 4
      %s29 = scalar_lea.hbm %s1, %s28
      %s31 = sshll.u32 %s29, 4
      %s32 = int_to_ptr.hbm [resolvable:$true] %s31
      %s33 = sshll.u32 [#allocation5], 4
      %s34 = int_to_ptr.vmem [resolvable:$true] %s33
      %36 = dma.hbm_to_vmem [thread:$0]  %s32, 64, %s34, [#allocation6]
    $region9: #{tpu_custom_call.1} parent=1 // pred_fallthru
      _
    // Predicated region
    $region10: #{tpu_custom_call.1} parent=1 // pred_check
      _
    $region11: #{tpu_custom_call.1} parent=1 // pred_check_branch
      %38 = sbr.rel (0) target = $region13
    $region12: #{tpu_custom_call.1} parent=1 // pred_region
      %40 = dma.done [#allocation3], 64
    $region13: #{tpu_custom_call.1} parent=1 // pred_fallthru
      _
    // Predicated region
    $region14: #{tpu_custom_call.1} parent=1 // pred_check
      _
    $region15: #{tpu_custom_call.1} parent=1 // pred_check_branch
      %42 = sbr.rel (0) target = $region17
    $region16: #{tpu_custom_call.1} parent=1 // pred_region
      %44 = dma.done [#allocation6], 64
    $region17: #{tpu_custom_call.1} parent=1 // pred_fallthru
      _
    %s45 = sadd.s32 0, 1
    %p46 = scmp.lt.s32.totalorder %s45, 0
    %s47 = scalar_select %p46, %s45, 0
    %v48 = vld [vmem:[#allocation2] sm:$0xf]
    %vm49 = vcmask 257024
    %50 = vst.msk [vmem:[#allocation7] sm:$0xf] %vm49, %v48
    %v51 = vld [vmem:[#allocation2] sm:$0xf]
    %53 = vrot.lane.b32.xlu0 %v51, 112
    %v54 = vpop.permute.xlu0 %53
    %s56 = scalar_lea.vmem [#allocation7], 4
    %57 = vst.msk [vmem:[%s56] sm:$0xf] %vm49, %v54
    %v58 = vld [vmem:[#allocation2] sm:$0xf]
    %60 = vrot.lane.b32.xlu0 %v58, 96
    %v61 = vpop.permute.xlu0 %60
    %s63 = scalar_lea.vmem [#allocation7], 8
    %64 = vst.msk [vmem:[%s63] sm:$0xf] %vm49, %v61
    %v65 = vld [vmem:[#allocation2] sm:$0xf]
    %67 = vrot.lane.b32.xlu0 %v65, 80
    %v68 = vpop.permute.xlu0 %67
    %s70 = scalar_lea.vmem [#allocation7], 12
    %71 = vst.msk [vmem:[%s70] sm:$0xf] %vm49, %v68
    %v72 = vld [vmem:[#allocation2] sm:$0xf]
    %74 = vrot.lane.b32.xlu0 %v72, 64
    %v75 = vpop.permute.xlu0 %74
    %s77 = scalar_lea.vmem [#allocation7], 16
    %78 = vst.msk [vmem:[%s77] sm:$0xf] %vm49, %v75
    %v79 = vld [vmem:[#allocation2] sm:$0xf]
    %81 = vrot.lane.b32.xlu0 %v79, 48
    %v82 = vpop.permute.xlu0 %81
    %s84 = scalar_lea.vmem [#allocation7], 20
    %85 = vst.msk [vmem:[%s84] sm:$0xf] %vm49, %v82
    %v86 = vld [vmem:[#allocation2] sm:$0xf]
    %88 = vrot.lane.b32.xlu0 %v86, 32
    %v89 = vpop.permute.xlu0 %88
    %s91 = scalar_lea.vmem [#allocation7], 24
    %92 = vst.msk [vmem:[%s91] sm:$0xf] %vm49, %v89
    %v93 = vld [vmem:[#allocation2] sm:$0xf]
    %v94 = vld [vmem:[#allocation5] sm:$0xf]
    %96 = vrot.lane.b32.xlu0 %v93, 16
    %v97 = vpop.permute.xlu0 %96
    %100 = vrot.lane.b32.xlu0 %v94, 16
    %v101 = vpop.permute.xlu0 %100
    %vm103 = vcmask 130048
    %v104 = vsel %vm103, %v97, %v101
    %s105 = scalar_lea.vmem [#allocation7], 28
    %106 = vst.msk [vmem:[%s105] sm:$0xf] %vm49, %v104
    // Predicated region
    $region18: #{tpu_custom_call.1} parent=1 // pred_check
      _
    $region19: #{tpu_custom_call.1} parent=1 // pred_check_branch
      %108 = sbr.rel (0) target = $region21
    $region20: #{tpu_custom_call.1} parent=1 // pred_region
      %110 = vsyncadd [#allocation4], 64
      %s111 = sshll.u32 [#allocation7], 4
      %s112 = int_to_ptr.vmem [resolvable:$true] %s111
      %s113 = sshll.u32 %s2, 4
      %s114 = int_to_ptr.hbm [resolvable:$true] %s113
      %119 = dma.vmem_to_hbm [thread:$0]  %s112, 448, %s114, [#allocation4], 64, 64, 4
    $region21: #{tpu_custom_call.1} parent=1 // pred_fallthru
      _
    // Predicated region
    $region22: #{tpu_custom_call.1} parent=1 // pred_check
      _
    $region23: #{tpu_custom_call.1} parent=1 // pred_check_branch
      %121 = sbr.rel (0) target = $region25
    $region24: #{tpu_custom_call.1} parent=1 // pred_region
      %123 = dma.done [#allocation4], 512
    $region25: #{tpu_custom_call.1} parent=1 // pred_fallthru
      _
    %124 = vsyncpa [#allocation3], 1
    %125 = vsyncpa [#allocation6], 1
    %126 = vsyncpa [#allocation4], 1

</llo_original>
